<compile_context>
chip_gen: v5e
topology: v5e:2x2
jax: 0.10.0
libtpu: 0.0.40
codegen_flags: <defaults>
</compile_context>

<pallas_src>
import jax
import jax.numpy as jnp
from jax import lax
from jax.experimental import pallas as pl
from jax.experimental.pallas import tpu as pltpu

EPS = 1e-5  # nn.BatchNorm1d default eps


def _round_up(v, m):
    return (v + m - 1) // m * m


def _lbnr_kernel(x_ref, w_ref, b_ref, g_ref, beta_ref, o_ref, acc_ref):
    """Grid = (M_tiles, K_tiles).  acc_ref: (N, TM) f32 accumulator."""
    k = pl.program_id(1)

    @pl.when(k == 0)
    def _():
        acc_ref[...] = jnp.zeros_like(acc_ref)

    # MXU: bf16 x bf16 -> f32 accumulation.
    acc_ref[...] += jnp.dot(x_ref[...], w_ref[...],
                            preferred_element_type=jnp.float32)

    @pl.when(k == pl.num_programs(1) - 1)
    def _():
        # Epilogue: bias + ReLU + BatchNorm (training-mode batch statistics).
        y = jnp.maximum(acc_ref[...] + b_ref[...], 0.0)            # (N, TM) f32

        # Single-pass statistics over the (full) batch dimension.
        mean = jnp.mean(y, axis=0, keepdims=True)                  # (1, TM)
        mean_sq = jnp.mean(y * y, axis=0, keepdims=True)           # (1, TM)
        var = jnp.maximum(mean_sq - mean * mean, 0.0)              # biased var
        inv_std = lax.rsqrt(var + EPS)                             # EUP slot

        # Fold BN affine into one scale/shift: 2 VALU ops per element.
        s = inv_std * g_ref[...]
        t = beta_ref[...] - mean * s
        o_ref[...] = y * s + t


def linear_batch_norm_relu(x, weight_t, bias, gamma, beta, *,
                           compute_dtype=jnp.bfloat16):
    """x: (N, K) f32; weight_t: (K, M); bias/gamma/beta: (M,) or (1, M).

    Returns (N, M) f32 = BatchNorm1d(ReLU(x @ weight_t + bias)).
    """
    N, K = x.shape
    Kw, M = weight_t.shape
    assert Kw == K

    Kp = _round_up(K, 128)
    Mp = _round_up(M, 128)

    # Wrapper-side zero padding: lane-dense output / full-width MXU contraction.
    xp = jnp.pad(x, ((0, 0), (0, Kp - K))).astype(compute_dtype)
    wp = jnp.pad(weight_t, ((0, Kp - K), (0, Mp - M))).astype(compute_dtype)
    bp = jnp.pad(bias.reshape(1, M), ((0, 0), (0, Mp - M))).astype(jnp.float32)
    gp = jnp.pad(gamma.reshape(1, M), ((0, 0), (0, Mp - M))).astype(jnp.float32)
    betap = jnp.pad(beta.reshape(1, M), ((0, 0), (0, Mp - M))).astype(jnp.float32)

    # Pick the biggest K/M tiles whose double-buffered footprint fits a
    # v7x-safe budget (N is never tiled: BN stats need the full batch).
    bytes_c = jnp.dtype(compute_dtype).itemsize

    def footprint(tk, tm):
        return (2 * N * tk * bytes_c        # x tiles (double buffered)
                + 2 * tk * tm * bytes_c     # weight tiles
                + 2 * N * tm * 4            # output tiles
                + N * tm * 4                # f32 accumulator scratch
                + 3 * 2 * tm * 4)           # bias / gamma / beta tiles

    tile_opts = [(min(t, Kp), min(t, Mp)) for t in (512, 256, 128)]
    tk, tm = tile_opts[-1]
    for cand in tile_opts:
        if footprint(*cand) <= 24 * 1024 * 1024:
            tk, tm = cand
            break

    vmem_limit = int(max(footprint(tk, tm) + 4 * 1024 * 1024, 16 * 1024 * 1024))

    out_padded = pl.pallas_call(
        _lbnr_kernel,
        out_shape=jax.ShapeDtypeStruct((N, Mp), jnp.float32),
        grid_spec=pltpu.PrefetchScalarGridSpec(
            num_scalar_prefetch=0,
            grid=(Mp // tm, Kp // tk),           # (feature tiles, K tiles)
            in_specs=[
                pl.BlockSpec((N, tk), lambda i, k: (0, k)),    # x
                pl.BlockSpec((tk, tm), lambda i, k: (k, i)),   # weight_t
                pl.BlockSpec((1, tm), lambda i, k: (0, i)),    # bias
                pl.BlockSpec((1, tm), lambda i, k: (0, i)),    # gamma
                pl.BlockSpec((1, tm), lambda i, k: (0, i)),    # beta
            ],
            out_specs=pl.BlockSpec((N, tm), lambda i, k: (0, i)),
            scratch_shapes=[pltpu.VMEM((N, tm), jnp.float32)],
        ),
        compiler_params=pltpu.CompilerParams(
            dimension_semantics=("parallel", "arbitrary"),
            vmem_limit_bytes=vmem_limit,
        ),
    )(xp, wp, bp, gp, betap)

    return out_padded[:, :M]


def reference(x, weight_t, bias, gamma, beta):
    y = x @ weight_t + bias.reshape(1, -1)
    y = jnp.maximum(y, 0.0)
    mean = jnp.mean(y, axis=0, keepdims=True)
    var = jnp.mean((y - mean) ** 2, axis=0, keepdims=True)
    return (y - mean) * lax.rsqrt(var + EPS) * gamma.reshape(1, -1) \
        + beta.reshape(1, -1)


if __name__ == "__main__":
    # Small shapes consistent with the module's forward: x is (batch, in_features)
    batch, in_features, out_features = 8, 32, 16

    key = jax.random.PRNGKey(0)
    kx, kw, kb = jax.random.split(key, 3)

    x = jax.random.normal(kx, (batch, in_features), dtype=jnp.float32)

    # Deterministic nn.Linear-style init: U(-1/sqrt(in), 1/sqrt(in))
    bound = 1.0 / (in_features ** 0.5)
    weight = jax.random.uniform(kw, (out_features, in_features),
                                dtype=jnp.float32, minval=-bound, maxval=bound)
    bias = jax.random.uniform(kb, (out_features,),
                              dtype=jnp.float32, minval=-bound, maxval=bound)
    weight_t = weight.T  # (in_features, out_features) for x @ W

    # BatchNorm1d affine params: gamma=1, beta=0 (PyTorch default init)
    gamma = jnp.ones((out_features,), dtype=jnp.float32)
    beta = jnp.zeros((out_features,), dtype=jnp.float32)

    ref = reference(x, weight_t, bias, gamma, beta)

    # f32 compute path: must match the f32 reference tightly.
    out_f32 = linear_batch_norm_relu(x, weight_t, bias, gamma, beta,
                                     compute_dtype=jnp.float32)
    out_f32 = jax.block_until_ready(out_f32)
    assert out_f32.shape == (batch, out_features)
    assert jnp.allclose(out_f32, ref, atol=1e-4, rtol=1e-4)

    # Default bf16 matmul path (v6e/v7x-optimized): looser tolerance vs f32 ref.
    out_bf16 = linear_batch_norm_relu(x, weight_t, bias, gamma, beta)
    out_bf16 = jax.block_until_ready(out_bf16)
    assert out_bf16.shape == (batch, out_features)
    assert jnp.allclose(out_bf16, ref, atol=3e-2, rtol=3e-2)

    print("KERNEL_OK")
</pallas_src>

<mosaic_0001>
module attributes {stable_mosaic.version = 11 : i64} {
  func.func @_lbnr_kernel(%arg0: i32, %arg1: i32, %arg2: memref<8x128xf32, #tpu.memory_space<vmem>>, %arg3: memref<128x128xf32, #tpu.memory_space<vmem>>, %arg4: memref<1x128xf32, #tpu.memory_space<vmem>>, %arg5: memref<1x128xf32, #tpu.memory_space<vmem>>, %arg6: memref<1x128xf32, #tpu.memory_space<vmem>>, %arg7: memref<8x128xf32, #tpu.memory_space<vmem>>, %arg8: memref<8x128xf32, #tpu.memory_space<vmem>>) attributes {dimension_semantics = [#tpu.dimension_semantics<parallel>, #tpu.dimension_semantics<arbitrary>], iteration_bounds = array<i64: 1, 1>, scalar_prefetch = 0 : i64, scratch_operands = 1 : i64, tpu.core_type = #tpu.core_type<tc>, window_params = [{transform_indices = @transform_0, window_bounds = array<i64: 8, 128>}, {transform_indices = @transform_1, window_bounds = array<i64: 128, 128>}, {transform_indices = @transform_2, window_bounds = array<i64: 1, 128>}, {transform_indices = @transform_3, window_bounds = array<i64: 1, 128>}, {transform_indices = @transform_4, window_bounds = array<i64: 1, 128>}, {transform_indices = @transform_5, window_bounds = array<i64: 8, 128>}]} {
    %c0_i32 = arith.constant 0 : i32
    %0 = arith.cmpi eq, %arg1, %c0_i32 : i32
    %1 = arith.extui %0 : i1 to i32
    %c0_i32_0 = arith.constant 0 : i32
    %2 = arith.cmpi ne, %1, %c0_i32_0 : i32
    scf.if %2 {
      %cst_10 = arith.constant 0.000000e+00 : f32
      %12 = vector.broadcast %cst_10 : f32 to vector<8x128xf32>
      %c0_11 = arith.constant 0 : index
      %c0_12 = arith.constant 0 : index
      %13 = vector.load %arg8[%c0_11, %c0_12] : memref<8x128xf32, #tpu.memory_space<vmem>>, vector<8x128xf32>
      tpu.vector_store %arg8[%c0_11, %c0_12], %12 {strides = array<i32>} : memref<8x128xf32, #tpu.memory_space<vmem>>, vector<8x128xf32>,
    } else {
    }
    %c0 = arith.constant 0 : index
    %c0_1 = arith.constant 0 : index
    %3 = vector.load %arg8[%c0, %c0_1] : memref<8x128xf32, #tpu.memory_space<vmem>>, vector<8x128xf32>
    %c0_2 = arith.constant 0 : index
    %c0_3 = arith.constant 0 : index
    %4 = vector.load %arg2[%c0_2, %c0_3] : memref<8x128xf32, #tpu.memory_space<vmem>>, vector<8x128xf32>
    %c0_4 = arith.constant 0 : index
    %c0_5 = arith.constant 0 : index
    %5 = vector.load %arg3[%c0_4, %c0_5] : memref<128x128xf32, #tpu.memory_space<vmem>>, vector<128x128xf32>
    %cst = arith.constant dense<0.000000e+00> : vector<8x128xf32>
    %6 = tpu.matmul %4, %5, %cst {dimension_numbers = #tpu.dot_dimension_numbers<[1], [0], [0], [1], [0, 0, 1, 1], [], []>} : vector<8x128xf32>, vector<128x128xf32>, vector<8x128xf32> -> vector<8x128xf32>
    %7 = arith.addf %3, %6 : vector<8x128xf32>
    %c0_6 = arith.constant 0 : index
    %c0_7 = arith.constant 0 : index
    %8 = vector.load %arg8[%c0_6, %c0_7] : memref<8x128xf32, #tpu.memory_space<vmem>>, vector<8x128xf32>
    tpu.vector_store %arg8[%c0_6, %c0_7], %7 {strides = array<i32>} : memref<8x128xf32, #tpu.memory_space<vmem>>, vector<8x128xf32>,
    %c0_i32_8 = arith.constant 0 : i32
    %9 = arith.cmpi eq, %arg1, %c0_i32_8 : i32
    %10 = arith.extui %9 : i1 to i32
    %c0_i32_9 = arith.constant 0 : i32
    %11 = arith.cmpi ne, %10, %c0_i32_9 : i32
    scf.if %11 {
      %c0_10 = arith.constant 0 : index
      %c0_11 = arith.constant 0 : index
      %12 = vector.load %arg8[%c0_10, %c0_11] : memref<8x128xf32, #tpu.memory_space<vmem>>, vector<8x128xf32>
      %c0_12 = arith.constant 0 : index
      %c0_13 = arith.constant 0 : index
      %13 = vector.load %arg4[%c0_12, %c0_13] : memref<1x128xf32, #tpu.memory_space<vmem>>, vector<1x128xf32>
      %14 = vector.broadcast %13 : vector<1x128xf32> to vector<8x128xf32>
      %15 = arith.addf %12, %14 : vector<8x128xf32>
      %cst_14 = arith.constant 0.000000e+00 : f32
      %16 = vector.broadcast %cst_14 : f32 to vector<8x128xf32>
      %17 = arith.maximumf %15, %16 : vector<8x128xf32>
      %cst_15 = arith.constant dense<0.000000e+00> : vector<128xf32>
      %18 = vector.multi_reduction <add>, %17, %cst_15 [0] : vector<8x128xf32> to vector<128xf32>
      %19 = vector.shape_cast %18 : vector<128xf32> to vector<1x128xf32>
      %cst_16 = arith.constant 8.000000e+00 : f32
      %20 = vector.broadcast %cst_16 : f32 to vector<1x128xf32>
      %21 = arith.divf %19, %20 : vector<1x128xf32>
      %22 = arith.mulf %17, %17 : vector<8x128xf32>
      %cst_17 = arith.constant dense<0.000000e+00> : vector<128xf32>
      %23 = vector.multi_reduction <add>, %22, %cst_17 [0] : vector<8x128xf32> to vector<128xf32>
      %24 = vector.shape_cast %23 : vector<128xf32> to vector<1x128xf32>
      %cst_18 = arith.constant 8.000000e+00 : f32
      %25 = vector.broadcast %cst_18 : f32 to vector<1x128xf32>
      %26 = arith.divf %24, %25 : vector<1x128xf32>
      %27 = arith.mulf %21, %21 : vector<1x128xf32>
      %28 = arith.subf %26, %27 : vector<1x128xf32>
      %cst_19 = arith.constant 0.000000e+00 : f32
      %29 = vector.broadcast %cst_19 : f32 to vector<1x128xf32>
      %30 = arith.maximumf %28, %29 : vector<1x128xf32>
      %cst_20 = arith.constant 9.99999974E-6 : f32
      %31 = vector.broadcast %cst_20 : f32 to vector<1x128xf32>
      %32 = arith.addf %30, %31 : vector<1x128xf32>
      %33 = math.rsqrt %32 : vector<1x128xf32>
      %c0_21 = arith.constant 0 : index
      %c0_22 = arith.constant 0 : index
      %34 = vector.load %arg5[%c0_21, %c0_22] : memref<1x128xf32, #tpu.memory_space<vmem>>, vector<1x128xf32>
      %35 = arith.mulf %33, %34 : vector<1x128xf32>
      %c0_23 = arith.constant 0 : index
      %c0_24 = arith.constant 0 : index
      %36 = vector.load %arg6[%c0_23, %c0_24] : memref<1x128xf32, #tpu.memory_space<vmem>>, vector<1x128xf32>
      %37 = arith.mulf %21, %35 : vector<1x128xf32>
      %38 = arith.subf %36, %37 : vector<1x128xf32>
      %39 = vector.broadcast %35 : vector<1x128xf32> to vector<8x128xf32>
      %40 = arith.mulf %17, %39 : vector<8x128xf32>
      %41 = vector.broadcast %38 : vector<1x128xf32> to vector<8x128xf32>
      %42 = arith.addf %40, %41 : vector<8x128xf32>
      %c0_25 = arith.constant 0 : index
      %c0_26 = arith.constant 0 : index
      %43 = vector.load %arg7[%c0_25, %c0_26] : memref<8x128xf32, #tpu.memory_space<vmem>>, vector<8x128xf32>
      tpu.vector_store %arg7[%c0_25, %c0_26], %42 {strides = array<i32>} : memref<8x128xf32, #tpu.memory_space<vmem>>, vector<8x128xf32>,
    } else {
    }
    return
  }
  func.func @transform_0(%arg0: i32, %arg1: i32) -> (i32, i32) {
    %c0_i32 = arith.constant 0 : i32
    %c0_i32_0 = arith.constant 0 : i32
    return %c0_i32, %arg1 : i32, i32
  }
  func.func @transform_1(%arg0: i32, %arg1: i32) -> (i32, i32) {
    %c0_i32 = arith.constant 0 : i32
    return %arg1, %arg0 : i32, i32
  }
  func.func @transform_2(%arg0: i32, %arg1: i32) -> (i32, i32) {
    %c0_i32 = arith.constant 0 : i32
    %c0_i32_0 = arith.constant 0 : i32
    return %c0_i32, %arg0 : i32, i32
  }
  func.func @transform_3(%arg0: i32, %arg1: i32) -> (i32, i32) {
    %c0_i32 = arith.constant 0 : i32
    %c0_i32_0 = arith.constant 0 : i32
    return %c0_i32, %arg0 : i32, i32
  }
  func.func @transform_4(%arg0: i32, %arg1: i32) -> (i32, i32) {
    %c0_i32 = arith.constant 0 : i32
    %c0_i32_0 = arith.constant 0 : i32
    return %c0_i32, %arg0 : i32, i32
  }
  func.func @transform_5(%arg0: i32, %arg1: i32) -> (i32, i32) {
    %c0_i32 = arith.constant 0 : i32
    %c0_i32_0 = arith.constant 0 : i32
    return %c0_i32, %arg0 : i32, i32
  }
}

</mosaic_0001>

<llo_original>
// kernel: tpu_custom_call.1
$region0: #{tpu_custom_call.1}
  #allocation0 [shape = 'u32[]', space=smem, size = 0x4, offset = 0x4, fixed_abs, tag = 'smem constant byte address 0x4 - core index']
  #allocation1 [shape = 'u32[72,128]{1,0:T(1,128)}', space=vmem, size = 0x9000, scoped, tag = 'internal scratch']
  #allocation2 [shape = 'f32[8,128]{1,0:T(8,128)}', space=vmem, size = 0x1000, scoped, tag = 'scratch operand']
  %s0 = inlined_call_operand.hbm [shape: f32[8,128], index: 0, kind: input, shape index: {}]
  %s1 = inlined_call_operand.hbm [shape: f32[128,128], index: 1, kind: input, shape index: {}]
  %s2 = inlined_call_operand.vmem [shape: f32[1,128], index: 2, kind: input, shape index: {}]
  %s3 = inlined_call_operand.vmem [shape: f32[1,128], index: 3, kind: input, shape index: {}]
  %s4 = inlined_call_operand.vmem [shape: f32[1,128], index: 4, kind: input, shape index: {}]
  %s5 = inlined_call_operand.hbm [shape: f32[8,128], index: 5, kind: output, shape index: {}]
  %s6 = sld [smem:[#allocation0]]
  $region46: #{tpu_custom_call.1} parent=0
    _
  %s8 = ssub.s32 1, %s6
  %s9 = scalar_select 0, %s8, %s6
  $region1: #{tpu_custom_call.1} parent=0
    #allocation3 [shape = 'u8[4096]{0}', space=vmem, size = 0x1000, scoped, tag = 'input window, operand 0, single buffered']
    #allocation4 [shape = 's32[1]{0}', space=sflag, size = 0x4, scoped, tag = 'scoped memory for tpu_custom_call.1']
    #allocation5 [shape = 's32[1]{0}', space=sflag, size = 0x4, scoped, tag = 'scoped memory for tpu_custom_call.1']
    #allocation6 [shape = 'u8[65536]{0}', space=vmem, size = 0x10000, scoped, tag = 'input window, operand 1, single buffered']
    #allocation7 [shape = 's32[1]{0}', space=sflag, size = 0x4, scoped, tag = 'scoped memory for tpu_custom_call.1']
    #allocation8 [shape = 'u8[4096]{0}', space=vmem, size = 0x1000, scoped, tag = 'output window, operand 0, single buffered']
    %10 = vsyncpa [#allocation4], 0
    %11 = vsyncpa [#allocation7], 0
    %12 = vsyncpa [#allocation5], 0
    // Predicated region
    $region2: #{tpu_custom_call.1} parent=1 // pred_check
      _
    $region3: #{tpu_custom_call.1} parent=1 // pred_check_branch
      %14 = sbr.rel (0) target = $region5
    $region4: #{tpu_custom_call.1} parent=1 // pred_region
      %16 = vsyncadd [#allocation4], 0
      %s18 = sshll.u32 %s0, 4
      %s19 = int_to_ptr.hbm [resolvable:$true] %s18
      %s20 = sshll.u32 [#allocation3], 4
      %s21 = int_to_ptr.vmem [resolvable:$true] %s20
      %23 = dma.hbm_to_vmem [thread:$0]  %s19, 128, %s21, [#allocation4]
    $region5: #{tpu_custom_call.1} parent=1 // pred_fallthru
      _
    // Predicated region
    $region6: #{tpu_custom_call.1} parent=1 // pred_check
      _
    $region7: #{tpu_custom_call.1} parent=1 // pred_check_branch
      %25 = sbr.rel (0) target = $region9
    $region8: #{tpu_custom_call.1} parent=1 // pred_region
      %27 = vsyncadd [#allocation7], 0
      %s28 = sshll.u32 %s1, 4
      %s29 = int_to_ptr.hbm [resolvable:$true] %s28
      %s30 = sshll.u32 [#allocation6], 4
      %s31 = int_to_ptr.vmem [resolvable:$true] %s30
      %36 = dma.hbm_to_vmem [thread:$0]  %s29, 2048, %s31, [#allocation7], 128, 128, 8
    $region9: #{tpu_custom_call.1} parent=1 // pred_fallthru
      _
    // Predicated region
    $region10: #{tpu_custom_call.1} parent=1 // pred_check
      _
    $region11: #{tpu_custom_call.1} parent=1 // pred_check_branch
      %38 = sbr.rel (0) target = $region13
    $region12: #{tpu_custom_call.1} parent=1 // pred_region
      _
    $region13: #{tpu_custom_call.1} parent=1 // pred_fallthru
      _
    // Predicated region
    $region14: #{tpu_custom_call.1} parent=1 // pred_check
      _
    $region15: #{tpu_custom_call.1} parent=1 // pred_check_branch
      %40 = sbr.rel (0) target = $region17
    $region16: #{tpu_custom_call.1} parent=1 // pred_region
      _
    $region17: #{tpu_custom_call.1} parent=1 // pred_fallthru
      _
    // Predicated region
    $region18: #{tpu_custom_call.1} parent=1 // pred_check
      _
    $region19: #{tpu_custom_call.1} parent=1 // pred_check_branch
      %42 = sbr.rel (0) target = $region21
    $region20: #{tpu_custom_call.1} parent=1 // pred_region
      _
    $region21: #{tpu_custom_call.1} parent=1 // pred_fallthru
      _
    // Predicated region
    $region22: #{tpu_custom_call.1} parent=1 // pred_check
      _
    $region23: #{tpu_custom_call.1} parent=1 // pred_check_branch
      %44 = sbr.rel (0) target = $region25
    $region24: #{tpu_custom_call.1} parent=1 // pred_region
      %46 = dma.done [#allocation4], 128
    $region25: #{tpu_custom_call.1} parent=1 // pred_fallthru
      _
    // Predicated region
    $region26: #{tpu_custom_call.1} parent=1 // pred_check
      _
    $region27: #{tpu_custom_call.1} parent=1 // pred_check_branch
      %48 = sbr.rel (0) target = $region29
    $region28: #{tpu_custom_call.1} parent=1 // pred_region
      %50 = dma.done [#allocation7], 2048
    $region29: #{tpu_custom_call.1} parent=1 // pred_fallthru
      _
    %p51 = scmp.eq.s32.totalorder 0, 0
    // Predicated region
    $region30: #{tpu_custom_call.1} parent=1 // pred_check
      %p52 = pneg %p51
    $region31: #{tpu_custom_call.1} parent=1 // pred_check_branch
      %54 = sbr.rel (%p52) target = $region33
    $region32: #{tpu_custom_call.1} parent=1 // pred_region
      %55 = vst [vmem:[#allocation2] sm:$0xff] 0.0
    $region33: #{tpu_custom_call.1} parent=1 // pred_fallthru
      _
    %v56 = vld [vmem:[#allocation2] sm:$0xff]
    %v57 = vld [vmem:[#allocation3] sm:$0xff]
    %v58 = vld [vmem:[#allocation6] sm:$0xff]
    %v59 = vld [vmem:[#allocation6 + $0x8] sm:$0xff]
    %v60 = vld [vmem:[#allocation6 + $0x10] sm:$0xff]
    %v61 = vld [vmem:[#allocation6 + $0x18] sm:$0xff]
    %v62 = vld [vmem:[#allocation6 + $0x20] sm:$0xff]
    %v63 = vld [vmem:[#allocation6 + $0x28] sm:$0xff]
    %v64 = vld [vmem:[#allocation6 + $0x30] sm:$0xff]
    %v65 = vld [vmem:[#allocation6 + $0x38] sm:$0xff]
    %v66 = vld [vmem:[#allocation6 + $0x40] sm:$0xff]
    %v67 = vld [vmem:[#allocation6 + $0x48] sm:$0xff]
    %v68 = vld [vmem:[#allocation6 + $0x50] sm:$0xff]
    %v69 = vld [vmem:[#allocation6 + $0x58] sm:$0xff]
    %v70 = vld [vmem:[#allocation6 + $0x60] sm:$0xff]
    %v71 = vld [vmem:[#allocation6 + $0x68] sm:$0xff]
    %v72 = vld [vmem:[#allocation6 + $0x70] sm:$0xff]
    %v73 = vld [vmem:[#allocation6 + $0x78] sm:$0xff]
    %74 = vmatpush.msra.mxu0 %v73
    %75 = vmatpush.msra.mxu0 %v72
    %76 = vmatpush.msra.mxu0 %v71
    %77 = vmatpush.msra.mxu0 %v70
    %78 = vmatpush.msra.mxu0 %v69
    %79 = vmatpush.msra.mxu0 %v68
    %80 = vmatpush.msra.mxu0 %v67
    %81 = vmatpush.msra.mxu0 %v66
    %82 = vmatpush.msra.mxu0 %v65
    %83 = vmatpush.msra.mxu0 %v64
    %84 = vmatpush.msra.mxu0 %v63
    %85 = vmatpush.msra.mxu0 %v62
    %86 = vmatpush.msra.mxu0 %v61
    %87 = vmatpush.msra.mxu0 %v60
    %88 = vmatpush.msra.mxu0 %v59
    %89 = vmatpush.msra.mxu0 %v58
    %90 = vmatmul.f32.gmra.mxu0 %v57
    %v91 = vpop.f32.mrf.mxu0
    %v92 = vadd.f32 0.0, %v91
    %93 = vdwg.mxu0
    %v94 = vadd.f32 %v56, %v92
    %95 = vst [vmem:[#allocation2] sm:$0xff] %v94
    // Predicated region
    $region34: #{tpu_custom_call.1} parent=1 // pred_check
      %p96 = pneg %p51
    $region35: #{tpu_custom_call.1} parent=1 // pred_check_branch
      %98 = sbr.rel (%p96) target = $region37
    $region36: #{tpu_custom_call.1} parent=1 // pred_region
      %v99 = vld [vmem:[#allocation2] sm:$0xff]
      %v100 = vld [vmem:[%s2] sm:$0x1]
      %v102 = vperm.slane %v100, 0
      %v104 = vadd.f32 %v99, %v102
      %v105 = vmax.f32 %v104, 0.0
      %v106 = vrot.slane %v105, 4
      %v107 = vadd.f32 %v105, %v106
      %v108 = vrot.slane %v107, 2
      %v109 = vadd.f32 %v107, %v108
      %v110 = vrot.slane %v109, 1
      %v111 = vadd.f32 %v109, %v110
      %v112 = vrcp.pop 8.0
      %v113 = vmul.f32 8.0, %v112
      %v114 = vsub.f32 1.0, %v113
      %v115 = vmul.f32 %v112, %v114
      %v116 = vadd.f32 %v112, %v115
      %vm117 = vweird.f32 %v112
      %v118 = vsel %vm117, %v112, %v116
      %v119 = vmul.f32 %v111, %v118
      %v120 = vmul.f32 %v105, %v105
      %v121 = vrot.slane %v120, 4
      %v122 = vadd.f32 %v120, %v121
      %v123 = vrot.slane %v122, 2
      %v124 = vadd.f32 %v122, %v123
      %v125 = vrot.slane %v124, 1
      %v126 = vadd.f32 %v124, %v125
      %v127 = vmul.f32 %v126, %v118
      %v128 = vmul.f32 %v119, %v119
      %v129 = vsub.f32 %v127, %v128
      %v130 = vmax.f32 %v129, 0.0
      %v131 = vadd.f32 %v130, 1e-05
      %v132 = vrsqrt.pop %v131
      %v133 = vmul.f32 %v132, %v131
      %v134 = vmul.f32 %v133, %v132
      %v135 = vmul.f32 0.5, %v134
      %v136 = vsub.f32 1.5, %v135
      %v137 = vmul.f32 %v132, %v136
      %vm138 = vweird.f32 %v131
      %vm139 = vweird.f32 %v132
      %vm140 = vmor %vm138, %vm139
      %v141 = vsel %vm140, %v132, %v137
      %v142 = vld [vmem:[%s3] sm:$0x1]
      %v143 = vmul.f32 %v141, %v142
      %v144 = vld [vmem:[%s4] sm:$0x1]
      %v145 = vmul.f32 %v119, %v143
      %v146 = vsub.f32 %v144, %v145
      %v147 = vperm.slane %v143, 0
      %v148 = vmul.f32 %v105, %v147
      %v150 = vperm.slane %v146, 0
      %v152 = vadd.f32 %v148, %v150
      %153 = vst [vmem:[#allocation8] sm:$0xff] %v152
    $region37: #{tpu_custom_call.1} parent=1 // pred_fallthru
      _
    // Predicated region
    $region38: #{tpu_custom_call.1} parent=1 // pred_check
      _
    $region39: #{tpu_custom_call.1} parent=1 // pred_check_branch
      %155 = sbr.rel (0) target = $region41
    $region40: #{tpu_custom_call.1} parent=1 // pred_region
      %157 = vsyncadd [#allocation5], 0
      %s159 = sshll.u32 [#allocation8], 4
      %s160 = int_to_ptr.vmem [resolvable:$true] %s159
      %s161 = sshll.u32 %s5, 4
      %s162 = int_to_ptr.hbm [resolvable:$true] %s161
      %164 = dma.vmem_to_hbm [thread:$0]  %s160, 128, %s162, [#allocation5]
    $region41: #{tpu_custom_call.1} parent=1 // pred_fallthru
      _
    // Predicated region
    $region42: #{tpu_custom_call.1} parent=1 // pred_check
      _
    $region43: #{tpu_custom_call.1} parent=1 // pred_check_branch
      %166 = sbr.rel (0) target = $region45
    $region44: #{tpu_custom_call.1} parent=1 // pred_region
      %168 = dma.done [#allocation5], 128
    $region45: #{tpu_custom_call.1} parent=1 // pred_fallthru
      _
    %169 = vsyncpa [#allocation4], 1
    %170 = vsyncpa [#allocation7], 1
    %171 = vsyncpa [#allocation5], 1

</llo_original>
